<compile_context>
chip_gen: v7x
topology: tpu7x:2x2x1
jax: 0.10.0
libtpu: 0.0.40
codegen_flags: <defaults>
</compile_context>

<pallas_src>
from functools import partial

import jax
import jax.numpy as jnp
from jax.experimental import pallas as pl
from jax.experimental.pallas import tpu as pltpu


def _round_up(x, m):
    return ((x + m - 1) // m) * m


def _choose_tiling(N, C, HW, tgt_itemsize):
    """Pick (bn, th, vmem_limit) so each grid step streams a few MiB of input."""
    try:  # generation-aware VMEM capacity (v5e/v6e: 128 MiB, v7x: 64 MiB / TC)
        phys = int(pltpu.get_tpu_info().vmem_capacity_bytes)
    except Exception:
        phys = 64 * 1024 * 1024                     # conservative fallback (v7x)
    vmem_budget = max(16 * 1024 * 1024, min(phys // 2, 64 * 1024 * 1024))
    vmem_limit = max(32 * 1024 * 1024, min(phys * 3 // 4, 112 * 1024 * 1024))

    # Per-grid-step input byte target: the ~0.35 us fixed step cost wants
    # >= ~0.5-1 MB per step at v6e/v7x HBM BW; aim for 4 MiB (v7x, 32 MiB
    # budget) .. 8 MiB (v5e/v6e, 64 MiB budget).
    step_bytes = max(2 * 1024 * 1024, min(8 * 1024 * 1024, vmem_budget // 8))

    max_th = max(128, _round_up(HW, 128))
    per_lane = C * 4 + tgt_itemsize                 # input bytes per pixel
    if max_th * per_lane < step_bytes and N > 1:
        # Small images: block several batch items per grid step.
        bn = int(max(1, min(N, step_bytes // (max_th * per_lane))))
        th = max_th
    else:
        bn = 1
        th = int(min(max_th, max(128, (step_bytes // per_lane) // 128 * 128)))

    # VMEM check: 2x double-buffered input tiles plus ~4 whole-tile (C, th)
    # f32 live temporaries (class iota, select result, pow chain, loss).
    per_lane_live = 2 * per_lane + 4 * C * 4
    max_lanes = max(128, (vmem_budget // per_lane_live) // 128 * 128)
    if bn * th > max_lanes:
        bn = max(1, min(bn, max_lanes // th))
        th = max(128, min(th, (max_lanes // bn) // 128 * 128))
    return bn, th, int(vmem_limit)


def _focal_loss_kernel(logit_ref, target_ref, out_ref, *, gamma, eps,
                       n_valid, hw_valid):
    n = pl.program_id(0)
    h = pl.program_id(1)

    logit = logit_ref[...]                      # (bn, C, th) f32
    tgt = target_ref[...]                       # (bn, 1, th) i32
    bn, _, th = logit.shape

    # gather(1, target): class-id iota on the sublane axis, select + reduce
    # over C (no onehot astype + multiply temporary).
    cls_ids = jax.lax.broadcasted_iota(jnp.int32, logit.shape, 1)
    picked = jnp.where(cls_ids == tgt, logit, 0.0)           # (bn, C, th)
    pt = jnp.sum(picked, axis=1, keepdims=True) + eps        # (bn, 1, th)

    # Edge masks (ragged HW tail and ragged N tail) computed in-kernel and
    # applied BEFORE log(): out-of-bounds garbage is replaced by 1.0 and
    # contributes exactly 0 to the partial sum.  Do not move this after log().
    col = jax.lax.broadcasted_iota(jnp.int32, (bn, 1, th), 2)
    row = jax.lax.broadcasted_iota(jnp.int32, (bn, 1, th), 0)
    valid = ((h * th + col) < hw_valid) & ((n * bn + row) < n_valid)
    pt = jnp.where(valid, pt, 1.0)

    logpt = jnp.log(pt)                                       # EUP, one/pixel
    one_minus = 1.0 - pt

    g = float(gamma)
    if g == int(g) and 0 <= int(g) <= 8:
        gi = int(g)                                           # VPU-only power
        if gi == 0:
            pw = jnp.ones_like(one_minus)
        else:
            pw = one_minus
            for _ in range(gi - 1):
                pw = pw * one_minus
    else:
        # pt = p + eps can exceed 1.0; clamp so a fractional power cannot
        # produce NaN (intentional, documented divergence from torch.pow).
        pw = jnp.power(jnp.maximum(one_minus, 0.0), g)

    loss = -pw * logpt                                        # (bn, 1, th)
    out_ref[...] = jnp.sum(loss).reshape(1, 1)                # per-tile partial


def focal_loss_pallas(logit, target, *, gamma=2.0, size_average=True,
                      eps=1e-6):
    """logit: (N, C, ...spatial) or (M, C) probabilities; target: int class ids."""
    if logit.ndim > 2:
        N, C = int(logit.shape[0]), int(logit.shape[1])
        x = logit.reshape(N, C, -1).astype(jnp.float32)       # (N, C, HW), no copy
    else:
        # TODO(synk): the 2-D (M, C) path pays one extra HBM read+write for the
        # XLA transpose before the kernel; a C-on-lanes kernel variant would
        # remove it, but the dominant 4-D segmentation path has no transpose.
        C = int(logit.shape[1])
        N = 1
        x = jnp.transpose(logit.astype(jnp.float32))[None]    # (1, C, M)
    HW = int(x.shape[-1])
    M = N * HW

    # TODO(synk): for small C the target stream could be int8/int16 (~15% HBM
    # traffic saving at C=4); kept int32 for lowering robustness of the
    # (bn, 1, th) packed-dtype tile.
    tgt = target.reshape(N, 1, HW).astype(jnp.int32)
    tgt_itemsize = 4

    bn, th, vmem_limit = _choose_tiling(N, C, HW, tgt_itemsize)
    grid_n = pl.cdiv(N, bn)
    grid_h = pl.cdiv(HW, th)

    kernel = partial(_focal_loss_kernel, gamma=float(gamma), eps=float(eps),
                     n_valid=N, hw_valid=HW)

    cost = pl.CostEstimate(
        flops=3 * N * C * HW + 8 * N * HW,
        transcendentals=N * HW,
        bytes_accessed=N * HW * (C * 4 + tgt_itemsize) + 4 * grid_n * grid_h)

    partials = pl.pallas_call(
        kernel,
        out_shape=jax.ShapeDtypeStruct((grid_n, grid_h), jnp.float32),
        grid_spec=pltpu.PrefetchScalarGridSpec(
            num_scalar_prefetch=0,
            grid=(grid_n, grid_h),
            in_specs=[
                pl.BlockSpec((bn, C, th), lambda n, h: (n, 0, h)),   # prob tile
                pl.BlockSpec((bn, 1, th), lambda n, h: (n, 0, h)),   # target tile
            ],
            out_specs=pl.BlockSpec((1, 1), lambda n, h: (n, h)),     # partial sums
        ),
        compiler_params=pltpu.CompilerParams(
            dimension_semantics=("parallel", "parallel"),
            vmem_limit_bytes=vmem_limit),
        cost_estimate=cost,
    )(x, tgt)

    # Final reduction / mean in plain JAX (better f32 accuracy for huge M).
    total = jnp.sum(partials)
    if size_average:
        return total / jnp.float32(M)
    return total


class FocalLossPallas:
    """Mirror of the PyTorch FocalLoss module (forward only)."""

    def __init__(self, num_classes, alpha=(0.25, 0.75), gamma=2,
                 size_average=True):
        self.num_classes = num_classes
        assert len(alpha) == num_classes
        # alpha is unused in forward(); kept for fidelity with the module.
        self.alpha = jnp.asarray(list(alpha), dtype=jnp.float32)
        self.gamma = gamma
        self.size_average = size_average
        self.eps = 1e-6

    def __call__(self, logit, target):
        return focal_loss_pallas(
            logit, target, gamma=self.gamma,
            size_average=self.size_average, eps=self.eps)


def _focal_loss_ref(logit, target, gamma=2.0, size_average=True, eps=1e-6):
    N, C = logit.shape[0], logit.shape[1]
    x = logit.reshape(N, C, -1).transpose(0, 2, 1).reshape(-1, C)
    t = target.reshape(-1)
    pt = jnp.take_along_axis(x, t[:, None], axis=1)[:, 0] + eps
    loss = -jnp.power(1.0 - pt, gamma) * jnp.log(pt)
    return loss.mean() if size_average else loss.sum()


if __name__ == "__main__":
    key = jax.random.PRNGKey(0)
    k1, k2 = jax.random.split(key)

    N, C, H, W = 2, 4, 16, 16
    # The module gathers + logs raw "logit" values, i.e. it expects
    # probability-like inputs; build them with a softmax over the class axis.
    raw = jax.random.normal(k1, (N, C, H, W), dtype=jnp.float32)
    probs = jax.nn.softmax(raw, axis=1)
    target = jax.random.randint(k2, (N, H, W), 0, C, dtype=jnp.int32)

    module = FocalLossPallas(num_classes=C, alpha=(0.25, 0.75, 0.25, 0.75),
                             gamma=2, size_average=True)
    out = module(probs, target)
    out = jax.block_until_ready(out)

    ref = _focal_loss_ref(probs, target, gamma=2.0, size_average=True,
                          eps=1e-6)
    assert jnp.allclose(out, ref, rtol=1e-5, atol=1e-6), (out, ref)

    print("KERNEL_OK")
</pallas_src>

<mosaic_0001>
module attributes {stable_mosaic.version = 11 : i64} {
  func.func @_focal_loss_kernel(%arg0: i32, %arg1: i32, %arg2: memref<2x4x256xf32, #tpu.memory_space<vmem>>, %arg3: memref<2x1x256xi32, #tpu.memory_space<vmem>>, %arg4: memref<1x1xf32, #tpu.memory_space<vmem>>) attributes {dimension_semantics = [#tpu.dimension_semantics<parallel>, #tpu.dimension_semantics<parallel>], iteration_bounds = array<i64: 1, 1>, scalar_prefetch = 0 : i64, scratch_operands = 0 : i64, tpu.core_type = #tpu.core_type<tc>, window_params = [{transform_indices = @transform_0, window_bounds = array<i64: 2, 4, 256>}, {transform_indices = @transform_1, window_bounds = array<i64: 2, 1, 256>}, {transform_indices = @transform_2, window_bounds = array<i64: 1, 1>}]} {
    %c0 = arith.constant 0 : index
    %c0_0 = arith.constant 0 : index
    %c0_1 = arith.constant 0 : index
    %0 = vector.load %arg2[%c0, %c0_0, %c0_1] : memref<2x4x256xf32, #tpu.memory_space<vmem>>, vector<2x4x256xf32>
    %c0_2 = arith.constant 0 : index
    %c0_3 = arith.constant 0 : index
    %c0_4 = arith.constant 0 : index
    %1 = vector.load %arg3[%c0_2, %c0_3, %c0_4] : memref<2x1x256xi32, #tpu.memory_space<vmem>>, vector<2x1x256xi32>
    %2 = tpu.iota {dimensions = array<i32: 1>} : vector<2x4x256xi32>
    %3 = vector.broadcast %1 : vector<2x1x256xi32> to vector<2x4x256xi32>
    %4 = arith.cmpi eq, %2, %3 : vector<2x4x256xi32>
    %cst = arith.constant 0.000000e+00 : f32
    %5 = vector.broadcast %cst : f32 to vector<2x4x256xf32>
    %6 = arith.select %4, %0, %5 : vector<2x4x256xi1>, vector<2x4x256xf32>
    %cst_5 = arith.constant dense<0.000000e+00> : vector<2x256xf32>
    %7 = vector.multi_reduction <add>, %6, %cst_5 [1] : vector<2x4x256xf32> to vector<2x256xf32>
    %8 = vector.shape_cast %7 : vector<2x256xf32> to vector<2x1x256xf32>
    %cst_6 = arith.constant 9.99999997E-7 : f32
    %9 = vector.broadcast %cst_6 : f32 to vector<2x1x256xf32>
    %10 = arith.addf %8, %9 : vector<2x1x256xf32>
    %11 = tpu.iota {dimensions = array<i32: 2>} : vector<2x1x256xi32>
    %12 = tpu.iota {dimensions = array<i32: 0>} : vector<2x1x256xi32>
    %c256_i32 = arith.constant 256 : i32
    %13 = arith.muli %arg1, %c256_i32 : i32
    %14 = vector.broadcast %13 : i32 to vector<2x1x256xi32>
    %15 = arith.addi %14, %11 : vector<2x1x256xi32>
    %c256_i32_7 = arith.constant 256 : i32
    %16 = vector.broadcast %c256_i32_7 : i32 to vector<2x1x256xi32>
    %17 = arith.cmpi slt, %15, %16 : vector<2x1x256xi32>
    %c2_i32 = arith.constant 2 : i32
    %18 = arith.muli %arg0, %c2_i32 : i32
    %19 = vector.broadcast %18 : i32 to vector<2x1x256xi32>
    %20 = arith.addi %19, %12 : vector<2x1x256xi32>
    %c2_i32_8 = arith.constant 2 : i32
    %21 = vector.broadcast %c2_i32_8 : i32 to vector<2x1x256xi32>
    %22 = arith.cmpi slt, %20, %21 : vector<2x1x256xi32>
    %23 = arith.andi %17, %22 : vector<2x1x256xi1>
    %cst_9 = arith.constant 1.000000e+00 : f32
    %24 = vector.broadcast %cst_9 : f32 to vector<2x1x256xf32>
    %25 = arith.select %23, %10, %24 : vector<2x1x256xi1>, vector<2x1x256xf32>
    %26 = math.log %25 : vector<2x1x256xf32>
    %cst_10 = arith.constant 1.000000e+00 : f32
    %27 = vector.broadcast %cst_10 : f32 to vector<2x1x256xf32>
    %28 = arith.subf %27, %25 : vector<2x1x256xf32>
    %29 = arith.mulf %28, %28 : vector<2x1x256xf32>
    %cst_11 = arith.constant 0.000000e+00 : f32
    %30 = vector.broadcast %cst_11 : f32 to vector<2x1x256xf32>
    %31 = arith.subf %30, %29 : vector<2x1x256xf32>
    %32 = arith.mulf %31, %26 : vector<2x1x256xf32>
    %33 = vector.shape_cast %32 : vector<2x1x256xf32> to vector<1x2x1x256xf32>
    %cst_12 = arith.constant dense<0.000000e+00> : vector<1xf32>
    %34 = vector.multi_reduction <add>, %33, %cst_12 [1, 2, 3] : vector<1x2x1x256xf32> to vector<1xf32>
    %35 = vector.shape_cast %34 : vector<1xf32> to vector<1x1x1x1xf32>
    %36 = vector.extract %35[0, 0, 0, 0] : f32 from vector<1x1x1x1xf32>
    %37 = vector.broadcast %36 : f32 to vector<1x1xf32>
    %c0_13 = arith.constant 0 : index
    %c0_14 = arith.constant 0 : index
    %38 = vector.load %arg4[%c0_13, %c0_14] : memref<1x1xf32, #tpu.memory_space<vmem>>, vector<1x1xf32>
    tpu.vector_store %arg4[%c0_13, %c0_14], %37 {strides = array<i32>} : memref<1x1xf32, #tpu.memory_space<vmem>>, vector<1x1xf32>,
    return
  }
  func.func @transform_0(%arg0: i32, %arg1: i32) -> (i32, i32, i32) {
    %c0_i32 = arith.constant 0 : i32
    %c0_i32_0 = arith.constant 0 : i32
    return %arg0, %c0_i32, %arg1 : i32, i32, i32
  }
  func.func @transform_1(%arg0: i32, %arg1: i32) -> (i32, i32, i32) {
    %c0_i32 = arith.constant 0 : i32
    %c0_i32_0 = arith.constant 0 : i32
    return %arg0, %c0_i32, %arg1 : i32, i32, i32
  }
  func.func @transform_2(%arg0: i32, %arg1: i32) -> (i32, i32) {
    %c0_i32 = arith.constant 0 : i32
    return %arg0, %arg1 : i32, i32
  }
}

</mosaic_0001>

<llo_original>
// kernel: tpu_custom_call.1
$region0: #{tpu_custom_call.1}
  #allocation0 [shape = 'u32[]', space=smem, size = 0x4, offset = 0x4, fixed_abs, tag = 'smem constant byte address 0x4 - core index']
  #allocation1 [shape = 'u32[144,128]{1,0:T(1,128)}', space=vmem, size = 0x12000, scoped, tag = 'internal scratch']
  %s0 = inlined_call_operand.hbm [shape: f32[2,4,256], index: 0, kind: input, shape index: {}]
  %s1 = inlined_call_operand.hbm [shape: s32[2,1,256], index: 1, kind: input, shape index: {}]
  %s2 = inlined_call_operand.hbm [shape: f32[1,1], index: 2, kind: output, shape index: {}]
  %s3 = sld [smem:[#allocation0]]
  $region26: #{tpu_custom_call.1} parent=0
    _
  %s5 = ssub.s32 1, %s3
  %s6 = scalar_select 0, %s5, %s3
  $region1: #{tpu_custom_call.1} parent=0
    #allocation2 [shape = 'u8[8192]{0}', space=vmem, size = 0x2000, scoped, tag = 'input window, operand 0, single buffered']
    #allocation3 [shape = 's32[1]{0}', space=sflag, size = 0x4, scoped, tag = 'scoped memory for tpu_custom_call.1']
    #allocation4 [shape = 's32[1]{0}', space=sflag, size = 0x4, scoped, tag = 'scoped memory for tpu_custom_call.1']
    #allocation5 [shape = 'u8[2048]{0}', space=vmem, size = 0x800, scoped, tag = 'input window, operand 1, single buffered']
    #allocation6 [shape = 's32[1]{0}', space=sflag, size = 0x4, scoped, tag = 'scoped memory for tpu_custom_call.1']
    #allocation7 [shape = 'u8[512]{0}', space=vmem, size = 0x400, scoped, tag = 'output window, operand 0, single buffered']
    %7 = vsyncpa [#allocation3], 0
    %8 = vsyncpa [#allocation6], 0
    %9 = vsyncpa [#allocation4], 0
    // Predicated region
    $region2: #{tpu_custom_call.1} parent=1 // pred_check
      _
    $region3: #{tpu_custom_call.1} parent=1 // pred_check_branch
      %11 = sbr.rel (0) target = $region5
    $region4: #{tpu_custom_call.1} parent=1 // pred_region
      %s13 = ssub.s32 256, 256
      %14 = vsyncadd [#allocation3], %s13
      %s15 = sshll.u32 [#allocation2], 4
      %s16 = int_to_ptr.vmem [resolvable:$true] %s15
      %21 = dma.hbm_to_vmem [thread:$0]  %s0, 256, %s16, [#allocation3], 128, 128, 8
    $region5: #{tpu_custom_call.1} parent=1 // pred_fallthru
      _
    // Predicated region
    $region6: #{tpu_custom_call.1} parent=1 // pred_check
      _
    $region7: #{tpu_custom_call.1} parent=1 // pred_check_branch
      %23 = sbr.rel (0) target = $region9
    $region8: #{tpu_custom_call.1} parent=1 // pred_region
      %s25 = ssub.s32 64, 64
      %26 = vsyncadd [#allocation6], %s25
      %s27 = sshll.u32 [#allocation5], 4
      %s28 = int_to_ptr.vmem [resolvable:$true] %s27
      %33 = dma.hbm_to_vmem [thread:$0]  %s1, 64, %s28, [#allocation6], 32, 32, 2
    $region9: #{tpu_custom_call.1} parent=1 // pred_fallthru
      _
    // Predicated region
    $region10: #{tpu_custom_call.1} parent=1 // pred_check
      _
    $region11: #{tpu_custom_call.1} parent=1 // pred_check_branch
      %35 = sbr.rel (0) target = $region13
    $region12: #{tpu_custom_call.1} parent=1 // pred_region
      %36 = dma.done [#allocation3], 256
    $region13: #{tpu_custom_call.1} parent=1 // pred_fallthru
      _
    // Predicated region
    $region14: #{tpu_custom_call.1} parent=1 // pred_check
      _
    $region15: #{tpu_custom_call.1} parent=1 // pred_check_branch
      %38 = sbr.rel (0) target = $region17
    $region16: #{tpu_custom_call.1} parent=1 // pred_region
      %39 = dma.done [#allocation6], 64
    $region17: #{tpu_custom_call.1} parent=1 // pred_fallthru
      _
    %v40 = vld [vmem:[#allocation2] sm:$0xff]
    %v41 = vld [vmem:[#allocation2 + $0x8] sm:$0xff]
    %v42 = vld [vmem:[#allocation5] sm:$0x3]
    %v43 = vld [vmem:[#allocation5 + $0x2] sm:$0x3]
    %v44 = vlaneseq
    %v45 = vshrl.u32 %v44, 7
    %v46 = vlaneseq
    %v47 = vshrl.u32 %v46, 7
    %v48 = vsub.s32 0, %v47
    %v49 = vrot.slane %v42, %v48
    %v50 = vlaneseq
    %v51 = vshrl.u32 %v50, 7
    %v52 = vsub.s32 1, %v51
    %v53 = vrot.slane %v42, %v52
    %v54 = vlaneseq
    %v55 = vshrl.u32 %v54, 7
    %v56 = vsub.s32 0, %v55
    %v57 = vrot.slane %v43, %v56
    %v58 = vlaneseq
    %v59 = vshrl.u32 %v58, 7
    %v60 = vsub.s32 1, %v59
    %v61 = vrot.slane %v43, %v60
    %vm62 = vcmp.eq.s32.totalorder %v45, %v49
    %vm63 = vcmp.eq.s32.totalorder %v45, %v53
    %vm64 = vcmp.eq.s32.totalorder %v45, %v57
    %vm65 = vcmp.eq.s32.totalorder %v45, %v61
    %v68 = vcombine.high %v40, %v40
    %v69 = vcombine.high %v41, %v41
    %v72 = vsel %vm62, %v40, 0.0
    %v73 = vsel %vm63, %v68, 0.0
    %v74 = vsel %vm64, %v41, 0.0
    %v75 = vsel %vm65, %v69, 0.0
    %vm76 = vcmask 1043456
    %v77 = vsel %vm76, %v72, 0.0
    %v78 = vrot.slane %v77, 4
    %v79 = vadd.f32 %v77, %v78
    %v80 = vrot.slane %v79, 2
    %v81 = vadd.f32 %v79, %v80
    %v82 = vrot.slane %v81, 1
    %v83 = vadd.f32 %v81, %v82
    %v84 = vsel %vm76, %v73, 0.0
    %v85 = vrot.slane %v84, 4
    %v86 = vadd.f32 %v84, %v85
    %v87 = vrot.slane %v86, 2
    %v88 = vadd.f32 %v86, %v87
    %v89 = vrot.slane %v88, 1
    %v90 = vadd.f32 %v88, %v89
    %v91 = vsel %vm76, %v74, 0.0
    %v92 = vrot.slane %v91, 4
    %v93 = vadd.f32 %v91, %v92
    %v94 = vrot.slane %v93, 2
    %v95 = vadd.f32 %v93, %v94
    %v96 = vrot.slane %v95, 1
    %v97 = vadd.f32 %v95, %v96
    %v98 = vsel %vm76, %v75, 0.0
    %v99 = vrot.slane %v98, 4
    %v100 = vadd.f32 %v98, %v99
    %v101 = vrot.slane %v100, 2
    %v102 = vadd.f32 %v100, %v101
    %v103 = vrot.slane %v102, 1
    %v104 = vadd.f32 %v102, %v103
    %v105 = vadd.f32 %v83, 1e-06
    %v106 = vadd.f32 %v90, 1e-06
    %v107 = vadd.f32 %v97, 1e-06
    %v108 = vadd.f32 %v104, 1e-06
    %v109 = vlaneseq
    %v110 = vand.u32 %v109, 127
    %v111 = vadd.s32 %v110, 128
    %s112 = smul.u32 0, 256
    %v113 = vstv %s112
    %v114 = vadd.s32 %v113, %v110
    %v115 = vadd.s32 %v113, %v111
    %vm116 = vcmp.lt.s32.totalorder %v114, 256
    %vm117 = vcmp.lt.s32.totalorder %v115, 256
    %s118 = smul.u32 0, 2
    %v119 = vstv %s118
    %v120 = vadd.s32 %v119, 1
    %vm121 = vcmp.lt.s32.totalorder %v119, 2
    %vm122 = vcmp.lt.s32.totalorder %v120, 2
    %vm123 = vmand %vm116, %vm121
    %vm124 = vmand %vm117, %vm121
    %vm125 = vmand %vm116, %vm122
    %vm126 = vmand %vm117, %vm122
    %v127 = vsel %vm123, %v105, 1.0
    %v128 = vsel %vm124, %v106, 1.0
    %v129 = vsel %vm125, %v107, 1.0
    %v130 = vsel %vm126, %v108, 1.0
    %v131 = vlog2.pop %v127
    %v132 = vmul.f32 %v131, 0.6931472
    %v133 = vlog2.pop %v128
    %v134 = vmul.f32 %v133, 0.6931472
    %v135 = vlog2.pop %v129
    %v136 = vmul.f32 %v135, 0.6931472
    %v137 = vlog2.pop %v130
    %v138 = vmul.f32 %v137, 0.6931472
    %v139 = vsub.f32 1.0, %v127
    %v140 = vsub.f32 1.0, %v128
    %v141 = vsub.f32 1.0, %v129
    %v142 = vsub.f32 1.0, %v130
    %v143 = vmul.f32 %v139, %v139
    %v144 = vmul.f32 %v140, %v140
    %v145 = vmul.f32 %v141, %v141
    %v146 = vmul.f32 %v142, %v142
    %v147 = vsub.f32 0.0, %v143
    %v148 = vsub.f32 0.0, %v144
    %v149 = vsub.f32 0.0, %v145
    %v150 = vsub.f32 0.0, %v146
    %v151 = vmul.f32 %v147, %v132
    %v152 = vmul.f32 %v148, %v134
    %v153 = vmul.f32 %v149, %v136
    %v154 = vmul.f32 %v150, %v138
    %vm155 = vcmask 1040384
    %v156 = vsel %vm155, %v151, 0.0
    %v157 = vsel %vm155, %v152, 0.0
    %v158 = vadd.f32 %v156, %v157
    %v159 = vsel %vm155, %v153, 0.0
    %v160 = vadd.f32 %v158, %v159
    %v161 = vsel %vm155, %v154, 0.0
    %v162 = vadd.f32 %v160, %v161
    %163 = vadd.xlane.f32.xlu0 %v162
    %v164 = vpop.xlane.xlu0 %163
    %v165 = vrot.slane %v164, 4
    %v166 = vadd.f32 %v164, %v165
    %v167 = vrot.slane %v166, 2
    %v168 = vadd.f32 %v166, %v167
    %v169 = vrot.slane %v168, 1
    %v170 = vadd.f32 %v168, %v169
    %s171 = vtos %v170
    %v172 = vstv %s171
    %vm173 = vcmask 0
    %174 = vst.msk [vmem:[#allocation7] sm:$0x1] %vm173, %v172
    // Predicated region
    $region18: #{tpu_custom_call.1} parent=1 // pred_check
      _
    $region19: #{tpu_custom_call.1} parent=1 // pred_check_branch
      %176 = sbr.rel (0) target = $region21
    $region20: #{tpu_custom_call.1} parent=1 // pred_region
      %s178 = ssub.s32 16, 16
      %179 = vsyncadd [#allocation4], %s178
      %s181 = sshll.u32 [#allocation7], 4
      %s182 = int_to_ptr.vmem [resolvable:$true] %s181
      %184 = dma.vmem_to_hbm [thread:$0]  %s182, 16, %s2, [#allocation4]
    $region21: #{tpu_custom_call.1} parent=1 // pred_fallthru
      _
    // Predicated region
    $region22: #{tpu_custom_call.1} parent=1 // pred_check
      _
    $region23: #{tpu_custom_call.1} parent=1 // pred_check_branch
      %186 = sbr.rel (0) target = $region25
    $region24: #{tpu_custom_call.1} parent=1 // pred_region
      %187 = dma.done [#allocation4], 16
    $region25: #{tpu_custom_call.1} parent=1 // pred_fallthru
      _
    %188 = vsyncpa [#allocation3], 1
    %189 = vsyncpa [#allocation6], 1
    %190 = vsyncpa [#allocation4], 1

</llo_original>
